<compile_context>
chip_gen: v7x
topology: tpu7x:2x2x1
jax: 0.10.0
libtpu: 0.0.40
codegen_flags: <defaults>
</compile_context>

<pallas_src>
import math

import jax
import jax.numpy as jnp
from jax import lax
from jax.experimental import pallas as pl
from jax.experimental.pallas import tpu as pltpu


P_STRIDE = 43       # packed parameters per channel: 3+3+3 + 9+3+3 + 9+3+3 + 3+1
SUB_ROWS = 16       # rows per inner chunk: (16, 128) f32 = 2 vregs per live array
TARGET_ROWS = 2048  # rows of (*,128) per grid step (~1 MiB f32 block)


def _cdiv(a, b):
    return -(-a // b)


def _largest_divisor_leq(n, cap):
    cap = max(1, min(n, cap))
    for d in range(cap, 0, -1):
        if n % d == 0:
            return d
    return 1


# ----------------------------------------------------------------------------
# Kernel
# ----------------------------------------------------------------------------
def _build_kernel(c_tile, tile_s, sub_rows):
    """Kernel factory (all args are static Python ints)."""
    num_full = tile_s // sub_rows
    pairs, odd = num_full // 2, num_full % 2
    rem = tile_s - num_full * sub_rows
    odd_start = pairs * 2 * sub_rows
    rem_start = num_full * sub_rows

    def kernel(p_ref, x_ref, o_ref):
        # p_ref: (C * P_STRIDE,) f32 in SMEM (pre-transformed parameters)
        # x_ref/o_ref: (c_tile, tile_s, 128) blocks in VMEM (input dtype / output dtype)
        c0 = pl.program_id(1) * c_tile

        def channel_body(j, carry):
            # Hoist the 43 per-channel scalars once per channel (cheap sld's);
            # they are consumed as scalar operands of VPU ops, so no 43-vreg
            # broadcast table is kept live across the row loop.
            base = (c0 + j) * P_STRIDE
            pv = [p_ref[base + k] for k in range(P_STRIDE)]

            def mlp(x):
                x = x.astype(jnp.float32)
                # layer 1: 1 -> 3, gated.  pv[0:3]=softplus(w1), pv[3:6]=b1, pv[6:9]=tanh(f1)
                h = []
                for t in range(3):
                    z = pv[t] * x + pv[3 + t]
                    h.append(z + jnp.tanh(z) * pv[6 + t])
                # layers 2 & 3: 3 -> 3, gated.
                off = 9
                for _ in range(2):
                    hn = []
                    for t in range(3):
                        z = (pv[off + 3 * t + 0] * h[0]
                             + pv[off + 3 * t + 1] * h[1]
                             + pv[off + 3 * t + 2] * h[2]
                             + pv[off + 9 + t])
                        hn.append(z + jnp.tanh(z) * pv[off + 12 + t])
                    h = hn
                    off += 15
                # layer 4: 3 -> 1, no activation (off == 39)
                return pv[39] * h[0] + pv[40] * h[1] + pv[41] * h[2] + pv[42]

            def do_chunk(r0, n_rows):
                o_ref[j, pl.ds(r0, n_rows), :] = mlp(
                    x_ref[j, pl.ds(r0, n_rows), :]).astype(o_ref.dtype)

            if pairs > 0:
                # Two independent SUB_ROWS chunks per iteration (manual 2x unroll)
                # so the scheduler can interleave them and hide tanh latency.
                def row_body(i, c):
                    r0 = pl.multiple_of(i * (2 * sub_rows), 2 * sub_rows)
                    do_chunk(r0, sub_rows)
                    do_chunk(pl.multiple_of(r0 + sub_rows, sub_rows), sub_rows)
                    return c
                lax.fori_loop(0, pairs, row_body, 0)
            if odd:
                do_chunk(odd_start, sub_rows)
            if rem:
                do_chunk(rem_start, rem)
            return carry

        if c_tile == 1:
            channel_body(0, 0)
        else:
            lax.fori_loop(0, c_tile, channel_body, 0)

    return kernel


# ----------------------------------------------------------------------------
# Parameter handling
# ----------------------------------------------------------------------------
def init_params(key, channels, dims=(3, 3, 3), init_scale=10.0):
    """Deterministic parameter init mirroring CDFEstimator/CDFLayer.__init__."""
    dims = list(dims)
    num_layers = len(dims) + 1
    scale = init_scale ** (1.0 / num_layers)
    dims = [1] + dims + [1]
    params = []
    for i in range(num_layers):
        in_dim, out_dim = dims[i], dims[i + 1]
        act = i < num_layers - 1
        wval = math.log(math.expm1(1.0 / scale / out_dim))
        w = jnp.full((channels, out_dim, in_dim), wval, dtype=jnp.float32)
        key, sub = jax.random.split(key)
        b = jax.random.uniform(sub, (channels, out_dim), dtype=jnp.float32,
                               minval=-0.5, maxval=0.5)
        f = jnp.zeros((channels, out_dim), dtype=jnp.float32) if act else None
        params.append((w, b, f))
    return params


def pack_params(params):
    """Apply softplus/tanh ONCE and pack into a flat (C*P_STRIDE,) SMEM table."""
    (w1, b1, f1), (w2, b2, f2), (w3, b3, f3), (w4, b4, _) = params
    C = w1.shape[0]
    sp = jax.nn.softplus  # numerically stable (matches F.softplus)
    cols = [
        sp(w1).reshape(C, 3), b1.reshape(C, 3), jnp.tanh(f1).reshape(C, 3),   # 0..8
        sp(w2).reshape(C, 9), b2.reshape(C, 3), jnp.tanh(f2).reshape(C, 3),   # 9..23
        sp(w3).reshape(C, 9), b3.reshape(C, 3), jnp.tanh(f3).reshape(C, 3),   # 24..38
        sp(w4).reshape(C, 3), b4.reshape(C, 1),                               # 39..42
    ]
    table = jnp.concatenate(cols, axis=1).astype(jnp.float32)  # (C, 43)
    return table.reshape(-1)


# ----------------------------------------------------------------------------
# Forward pass (exact reproduction of CDFEstimator.forward semantics)
# ----------------------------------------------------------------------------
def cdf_estimator_forward(x, params, *, target_rows=TARGET_ROWS):
    orig_dtype = x.dtype
    N, C = x.shape[0], x.shape[1]
    spatial = tuple(x.shape[2:])
    S = 1
    for d in spatial:
        S *= d
    rows = _cdiv(S, 128)

    # --- tiling: lane-dense (rows,128) per channel; block the channel axis so
    #     every grid step carries ~target_rows x 128 elements of work ----------
    if rows <= target_rows:
        tile_s, rows_pad, row_grid = rows, rows, 1
        c_tile = _largest_divisor_leq(C, max(1, target_rows // max(rows, 1)))
    else:
        tile_s = target_rows                          # multiple of SUB_ROWS
        rows_pad = _cdiv(rows, tile_s) * tile_s
        row_grid = rows_pad // tile_s
        c_tile = 1

    # v7x: keep >= 2 grid steps along the parallel axes so both TCs get work.
    def _steps(ct, rg):
        return N * (C // ct) * rg
    while c_tile > 1 and _steps(c_tile, row_grid) < 2:
        c_tile = _largest_divisor_leq(C, c_tile - 1)
    if _steps(c_tile, row_grid) < 2 and row_grid == 1 and tile_s >= 16 and tile_s % 16 == 0:
        tile_s //= 2
        row_grid = 2

    # --- pad only the ragged lane tail (no pad when S % 128 == 0); keep the
    #     original dtype end-to-end: the kernel casts in-register --------------
    pad = rows_pad * 128 - S
    x3 = x.reshape(N, C, S)
    if pad:
        x3 = jnp.pad(x3, ((0, 0), (0, 0), (0, pad)))
    x4 = x3.reshape(N, C, rows_pad, 128)

    ptab = pack_params(params)                        # (C*43,) f32 -> SMEM

    data_spec = pl.BlockSpec((None, c_tile, tile_s, 128),
                             lambda n, cb, m: (n, cb, m, 0))
    y4 = pl.pallas_call(
        _build_kernel(c_tile, tile_s, SUB_ROWS),
        out_shape=jax.ShapeDtypeStruct((N, C, rows_pad, 128), orig_dtype),
        grid=(N, C // c_tile, row_grid),
        in_specs=[
            pl.BlockSpec(memory_space=pltpu.MemorySpace.SMEM),  # packed params
            data_spec,                                          # x block
        ],
        out_specs=data_spec,
        compiler_params=pltpu.CompilerParams(
            dimension_semantics=("parallel", "parallel", "parallel")),
    )(ptab, x4)

    # --- drop padding (before any element-mixing reshape), restore spatial ---
    y = y4.reshape(N, C, rows_pad * 128)
    if pad:
        y = y[:, :, :S]
    y = y.reshape((N, C) + spatial)

    # --- reproduce the PyTorch output glue: permute(p) applied twice, composed
    #     into ONE transpose (identity, and skipped, for 1-D spatial).
    #     NOTE: for >=2-D spatial this is intentionally NOT (N, C, *spatial) —
    #     it matches the reference module's behaviour exactly.
    p = list(range(len(spatial) + 2))
    p.pop(1)
    p.append(1)
    q = [p[p[i]] for i in range(len(p))]
    if q != list(range(len(q))):
        y = jnp.transpose(y, q)
    return y


# ----------------------------------------------------------------------------
# Pure-JAX reference (op-for-op mirror of the PyTorch module)
# ----------------------------------------------------------------------------
def cdf_estimator_reference(x, params):
    N, C = x.shape[0], x.shape[1]
    spatial = x.shape[2:]
    dim_indices = list(range(len(spatial) + 2))
    dim_indices.pop(1)
    dim_indices.append(1)
    h = jnp.transpose(x, dim_indices).reshape(-1, C, 1, 1)  # (M, C, 1, 1)
    for (w, b, f) in params:
        ws = jax.nn.softplus(w)                              # (C, out, in)
        z = jnp.einsum('coi,mcix->mcox', ws, h) + b[None, :, :, None]
        if f is not None:
            z = z + jnp.tanh(z) * jnp.tanh(f)[None, :, :, None]
        h = z
    y = h.reshape((N,) + tuple(spatial) + (C,))
    return jnp.transpose(y, dim_indices)


# ----------------------------------------------------------------------------
if __name__ == "__main__":
    key = jax.random.PRNGKey(0)
    kx, kp = jax.random.split(key)

    fwd = jax.jit(cdf_estimator_forward)

    # (2,4,16,16): small 2-D spatial, whole-C channel block;
    # (2,3,100):   1-D spatial with ragged lane tail (pad path), odd C;
    # (1,2,128,128): exercises the unrolled row-chunk fori path, c_tile==1;
    # (2,32,16,16): channel-heavy/small-spatial regime (channel fori loop).
    test_shapes = [(2, 4, 16, 16), (2, 3, 100), (1, 2, 128, 128), (2, 32, 16, 16)]
    for shape in test_shapes:
        kx, sub = jax.random.split(kx)
        C = shape[1]
        params = init_params(kp, channels=C, dims=(3, 3, 3), init_scale=10.0)
        x = jax.random.normal(sub, shape, dtype=jnp.float32)

        out = jax.block_until_ready(fwd(x, params))
        ref = cdf_estimator_reference(x, params)

        assert out.shape == ref.shape, (shape, out.shape, ref.shape)
        assert out.dtype == x.dtype, (shape, out.dtype)
        assert jnp.allclose(out, ref, atol=1e-5, rtol=1e-5), \
            f"mismatch vs reference for {shape}"

    print("KERNEL_OK")
</pallas_src>

<mosaic_0001>
module attributes {stable_mosaic.version = 11 : i64} {
  func.func @kernel(%arg0: i32, %arg1: i32, %arg2: i32, %arg3: memref<172xf32, #tpu.memory_space<smem>>, %arg4: memref<1x4x2x128xf32, #tpu.memory_space<vmem>>, %arg5: memref<1x4x2x128xf32, #tpu.memory_space<vmem>>) attributes {dimension_semantics = [#tpu.dimension_semantics<parallel>, #tpu.dimension_semantics<parallel>, #tpu.dimension_semantics<parallel>], iteration_bounds = array<i64: 2, 1, 1>, scalar_prefetch = 0 : i64, scratch_operands = 0 : i64, tpu.core_type = #tpu.core_type<tc>, window_params = [{transform_indices = @transform_0, window_bounds = array<i64: 172>}, {transform_indices = @transform_1, window_bounds = array<i64: 1, 4, 2, 128>}, {transform_indices = @transform_2, window_bounds = array<i64: 1, 4, 2, 128>}]} {
    %c4_i32 = arith.constant 4 : i32
    %0 = arith.muli %arg1, %c4_i32 : i32
    %c0_i32 = arith.constant 0 : i32
    %c4_i32_0 = arith.constant 4 : i32
    %1 = arith.addi %c0_i32, %c4_i32_0 : i32
    %c1_i32 = arith.constant 1 : i32
    scf.for %arg6 = %c0_i32 to %1 step %c1_i32  : i32 {
      %2 = arith.addi %0, %arg6 : i32
      %c43_i32 = arith.constant 43 : i32
      %3 = arith.muli %2, %c43_i32 : i32
      %c0_i32_2 = arith.constant 0 : i32
      %4 = arith.addi %3, %c0_i32_2 : i32
      %5 = arith.index_cast %4 : i32 to index
      %6 = memref.load %arg3[%5] : memref<172xf32, #tpu.memory_space<smem>>
      %c1_i32_3 = arith.constant 1 : i32
      %7 = arith.addi %3, %c1_i32_3 : i32
      %8 = arith.index_cast %7 : i32 to index
      %9 = memref.load %arg3[%8] : memref<172xf32, #tpu.memory_space<smem>>
      %c2_i32 = arith.constant 2 : i32
      %10 = arith.addi %3, %c2_i32 : i32
      %11 = arith.index_cast %10 : i32 to index
      %12 = memref.load %arg3[%11] : memref<172xf32, #tpu.memory_space<smem>>
      %c3_i32 = arith.constant 3 : i32
      %13 = arith.addi %3, %c3_i32 : i32
      %14 = arith.index_cast %13 : i32 to index
      %15 = memref.load %arg3[%14] : memref<172xf32, #tpu.memory_space<smem>>
      %c4_i32_4 = arith.constant 4 : i32
      %16 = arith.addi %3, %c4_i32_4 : i32
      %17 = arith.index_cast %16 : i32 to index
      %18 = memref.load %arg3[%17] : memref<172xf32, #tpu.memory_space<smem>>
      %c5_i32 = arith.constant 5 : i32
      %19 = arith.addi %3, %c5_i32 : i32
      %20 = arith.index_cast %19 : i32 to index
      %21 = memref.load %arg3[%20] : memref<172xf32, #tpu.memory_space<smem>>
      %c6_i32 = arith.constant 6 : i32
      %22 = arith.addi %3, %c6_i32 : i32
      %23 = arith.index_cast %22 : i32 to index
      %24 = memref.load %arg3[%23] : memref<172xf32, #tpu.memory_space<smem>>
      %c7_i32 = arith.constant 7 : i32
      %25 = arith.addi %3, %c7_i32 : i32
      %26 = arith.index_cast %25 : i32 to index
      %27 = memref.load %arg3[%26] : memref<172xf32, #tpu.memory_space<smem>>
      %c8_i32 = arith.constant 8 : i32
      %28 = arith.addi %3, %c8_i32 : i32
      %29 = arith.index_cast %28 : i32 to index
      %30 = memref.load %arg3[%29] : memref<172xf32, #tpu.memory_space<smem>>
      %c9_i32 = arith.constant 9 : i32
      %31 = arith.addi %3, %c9_i32 : i32
      %32 = arith.index_cast %31 : i32 to index
      %33 = memref.load %arg3[%32] : memref<172xf32, #tpu.memory_space<smem>>
      %c10_i32 = arith.constant 10 : i32
      %34 = arith.addi %3, %c10_i32 : i32
      %35 = arith.index_cast %34 : i32 to index
      %36 = memref.load %arg3[%35] : memref<172xf32, #tpu.memory_space<smem>>
      %c11_i32 = arith.constant 11 : i32
      %37 = arith.addi %3, %c11_i32 : i32
      %38 = arith.index_cast %37 : i32 to index
      %39 = memref.load %arg3[%38] : memref<172xf32, #tpu.memory_space<smem>>
      %c12_i32 = arith.constant 12 : i32
      %40 = arith.addi %3, %c12_i32 : i32
      %41 = arith.index_cast %40 : i32 to index
      %42 = memref.load %arg3[%41] : memref<172xf32, #tpu.memory_space<smem>>
      %c13_i32 = arith.constant 13 : i32
      %43 = arith.addi %3, %c13_i32 : i32
      %44 = arith.index_cast %43 : i32 to index
      %45 = memref.load %arg3[%44] : memref<172xf32, #tpu.memory_space<smem>>
      %c14_i32 = arith.constant 14 : i32
      %46 = arith.addi %3, %c14_i32 : i32
      %47 = arith.index_cast %46 : i32 to index
      %48 = memref.load %arg3[%47] : memref<172xf32, #tpu.memory_space<smem>>
      %c15_i32 = arith.constant 15 : i32
      %49 = arith.addi %3, %c15_i32 : i32
      %50 = arith.index_cast %49 : i32 to index
      %51 = memref.load %arg3[%50] : memref<172xf32, #tpu.memory_space<smem>>
      %c16_i32 = arith.constant 16 : i32
      %52 = arith.addi %3, %c16_i32 : i32
      %53 = arith.index_cast %52 : i32 to index
      %54 = memref.load %arg3[%53] : memref<172xf32, #tpu.memory_space<smem>>
      %c17_i32 = arith.constant 17 : i32
      %55 = arith.addi %3, %c17_i32 : i32
      %56 = arith.index_cast %55 : i32 to index
      %57 = memref.load %arg3[%56] : memref<172xf32, #tpu.memory_space<smem>>
      %c18_i32 = arith.constant 18 : i32
      %58 = arith.addi %3, %c18_i32 : i32
      %59 = arith.index_cast %58 : i32 to index
      %60 = memref.load %arg3[%59] : memref<172xf32, #tpu.memory_space<smem>>
      %c19_i32 = arith.constant 19 : i32
      %61 = arith.addi %3, %c19_i32 : i32
      %62 = arith.index_cast %61 : i32 to index
      %63 = memref.load %arg3[%62] : memref<172xf32, #tpu.memory_space<smem>>
      %c20_i32 = arith.constant 20 : i32
      %64 = arith.addi %3, %c20_i32 : i32
      %65 = arith.index_cast %64 : i32 to index
      %66 = memref.load %arg3[%65] : memref<172xf32, #tpu.memory_space<smem>>
      %c21_i32 = arith.constant 21 : i32
      %67 = arith.addi %3, %c21_i32 : i32
      %68 = arith.index_cast %67 : i32 to index
      %69 = memref.load %arg3[%68] : memref<172xf32, #tpu.memory_space<smem>>
      %c22_i32 = arith.constant 22 : i32
      %70 = arith.addi %3, %c22_i32 : i32
      %71 = arith.index_cast %70 : i32 to index
      %72 = memref.load %arg3[%71] : memref<172xf32, #tpu.memory_space<smem>>
      %c23_i32 = arith.constant 23 : i32
      %73 = arith.addi %3, %c23_i32 : i32
      %74 = arith.index_cast %73 : i32 to index
      %75 = memref.load %arg3[%74] : memref<172xf32, #tpu.memory_space<smem>>
      %c24_i32 = arith.constant 24 : i32
      %76 = arith.addi %3, %c24_i32 : i32
      %77 = arith.index_cast %76 : i32 to index
      %78 = memref.load %arg3[%77] : memref<172xf32, #tpu.memory_space<smem>>
      %c25_i32 = arith.constant 25 : i32
      %79 = arith.addi %3, %c25_i32 : i32
      %80 = arith.index_cast %79 : i32 to index
      %81 = memref.load %arg3[%80] : memref<172xf32, #tpu.memory_space<smem>>
      %c26_i32 = arith.constant 26 : i32
      %82 = arith.addi %3, %c26_i32 : i32
      %83 = arith.index_cast %82 : i32 to index
      %84 = memref.load %arg3[%83] : memref<172xf32, #tpu.memory_space<smem>>
      %c27_i32 = arith.constant 27 : i32
      %85 = arith.addi %3, %c27_i32 : i32
      %86 = arith.index_cast %85 : i32 to index
      %87 = memref.load %arg3[%86] : memref<172xf32, #tpu.memory_space<smem>>
      %c28_i32 = arith.constant 28 : i32
      %88 = arith.addi %3, %c28_i32 : i32
      %89 = arith.index_cast %88 : i32 to index
      %90 = memref.load %arg3[%89] : memref<172xf32, #tpu.memory_space<smem>>
      %c29_i32 = arith.constant 29 : i32
      %91 = arith.addi %3, %c29_i32 : i32
      %92 = arith.index_cast %91 : i32 to index
      %93 = memref.load %arg3[%92] : memref<172xf32, #tpu.memory_space<smem>>
      %c30_i32 = arith.constant 30 : i32
      %94 = arith.addi %3, %c30_i32 : i32
      %95 = arith.index_cast %94 : i32 to index
      %96 = memref.load %arg3[%95] : memref<172xf32, #tpu.memory_space<smem>>
      %c31_i32 = arith.constant 31 : i32
      %97 = arith.addi %3, %c31_i32 : i32
      %98 = arith.index_cast %97 : i32 to index
      %99 = memref.load %arg3[%98] : memref<172xf32, #tpu.memory_space<smem>>
      %c32_i32 = arith.constant 32 : i32
      %100 = arith.addi %3, %c32_i32 : i32
      %101 = arith.index_cast %100 : i32 to index
      %102 = memref.load %arg3[%101] : memref<172xf32, #tpu.memory_space<smem>>
      %c33_i32 = arith.constant 33 : i32
      %103 = arith.addi %3, %c33_i32 : i32
      %104 = arith.index_cast %103 : i32 to index
      %105 = memref.load %arg3[%104] : memref<172xf32, #tpu.memory_space<smem>>
      %c34_i32 = arith.constant 34 : i32
      %106 = arith.addi %3, %c34_i32 : i32
      %107 = arith.index_cast %106 : i32 to index
      %108 = memref.load %arg3[%107] : memref<172xf32, #tpu.memory_space<smem>>
      %c35_i32 = arith.constant 35 : i32
      %109 = arith.addi %3, %c35_i32 : i32
      %110 = arith.index_cast %109 : i32 to index
      %111 = memref.load %arg3[%110] : memref<172xf32, #tpu.memory_space<smem>>
      %c36_i32 = arith.constant 36 : i32
      %112 = arith.addi %3, %c36_i32 : i32
      %113 = arith.index_cast %112 : i32 to index
      %114 = memref.load %arg3[%113] : memref<172xf32, #tpu.memory_space<smem>>
      %c37_i32 = arith.constant 37 : i32
      %115 = arith.addi %3, %c37_i32 : i32
      %116 = arith.index_cast %115 : i32 to index
      %117 = memref.load %arg3[%116] : memref<172xf32, #tpu.memory_space<smem>>
      %c38_i32 = arith.constant 38 : i32
      %118 = arith.addi %3, %c38_i32 : i32
      %119 = arith.index_cast %118 : i32 to index
      %120 = memref.load %arg3[%119] : memref<172xf32, #tpu.memory_space<smem>>
      %c39_i32 = arith.constant 39 : i32
      %121 = arith.addi %3, %c39_i32 : i32
      %122 = arith.index_cast %121 : i32 to index
      %123 = memref.load %arg3[%122] : memref<172xf32, #tpu.memory_space<smem>>
      %c40_i32 = arith.constant 40 : i32
      %124 = arith.addi %3, %c40_i32 : i32
      %125 = arith.index_cast %124 : i32 to index
      %126 = memref.load %arg3[%125] : memref<172xf32, #tpu.memory_space<smem>>
      %c41_i32 = arith.constant 41 : i32
      %127 = arith.addi %3, %c41_i32 : i32
      %128 = arith.index_cast %127 : i32 to index
      %129 = memref.load %arg3[%128] : memref<172xf32, #tpu.memory_space<smem>>
      %c42_i32 = arith.constant 42 : i32
      %130 = arith.addi %3, %c42_i32 : i32
      %131 = arith.index_cast %130 : i32 to index
      %132 = memref.load %arg3[%131] : memref<172xf32, #tpu.memory_space<smem>>
      %c0 = arith.constant 0 : index
      %133 = arith.index_cast %arg6 : i32 to index
      %c0_5 = arith.constant 0 : index
      %c0_6 = arith.constant 0 : index
      %134 = vector.load %arg4[%c0, %133, %c0_5, %c0_6] : memref<1x4x2x128xf32, #tpu.memory_space<vmem>>, vector<1x1x2x128xf32>
      %135 = vector.shape_cast %134 : vector<1x1x2x128xf32> to vector<2x128xf32>
      %136 = vector.broadcast %6 : f32 to vector<2x128xf32>
      %137 = arith.mulf %136, %135 : vector<2x128xf32>
      %138 = vector.broadcast %15 : f32 to vector<2x128xf32>
      %139 = arith.addf %137, %138 : vector<2x128xf32>
      %140 = math.tanh %139 : vector<2x128xf32>
      %141 = vector.broadcast %24 : f32 to vector<2x128xf32>
      %142 = arith.mulf %140, %141 : vector<2x128xf32>
      %143 = arith.addf %139, %142 : vector<2x128xf32>
      %144 = vector.broadcast %9 : f32 to vector<2x128xf32>
      %145 = arith.mulf %144, %135 : vector<2x128xf32>
      %146 = vector.broadcast %18 : f32 to vector<2x128xf32>
      %147 = arith.addf %145, %146 : vector<2x128xf32>
      %148 = math.tanh %147 : vector<2x128xf32>
      %149 = vector.broadcast %27 : f32 to vector<2x128xf32>
      %150 = arith.mulf %148, %149 : vector<2x128xf32>
      %151 = arith.addf %147, %150 : vector<2x128xf32>
      %152 = vector.broadcast %12 : f32 to vector<2x128xf32>
      %153 = arith.mulf %152, %135 : vector<2x128xf32>
      %154 = vector.broadcast %21 : f32 to vector<2x128xf32>
      %155 = arith.addf %153, %154 : vector<2x128xf32>
      %156 = math.tanh %155 : vector<2x128xf32>
      %157 = vector.broadcast %30 : f32 to vector<2x128xf32>
      %158 = arith.mulf %156, %157 : vector<2x128xf32>
      %159 = arith.addf %155, %158 : vector<2x128xf32>
      %160 = vector.broadcast %33 : f32 to vector<2x128xf32>
      %161 = arith.mulf %160, %143 : vector<2x128xf32>
      %162 = vector.broadcast %36 : f32 to vector<2x128xf32>
      %163 = arith.mulf %162, %151 : vector<2x128xf32>
      %164 = arith.addf %161, %163 : vector<2x128xf32>
      %165 = vector.broadcast %39 : f32 to vector<2x128xf32>
      %166 = arith.mulf %165, %159 : vector<2x128xf32>
      %167 = arith.addf %164, %166 : vector<2x128xf32>
      %168 = vector.broadcast %60 : f32 to vector<2x128xf32>
      %169 = arith.addf %167, %168 : vector<2x128xf32>
      %170 = math.tanh %169 : vector<2x128xf32>
      %171 = vector.broadcast %69 : f32 to vector<2x128xf32>
      %172 = arith.mulf %170, %171 : vector<2x128xf32>
      %173 = arith.addf %169, %172 : vector<2x128xf32>
      %174 = vector.broadcast %42 : f32 to vector<2x128xf32>
      %175 = arith.mulf %174, %143 : vector<2x128xf32>
      %176 = vector.broadcast %45 : f32 to vector<2x128xf32>
      %177 = arith.mulf %176, %151 : vector<2x128xf32>
      %178 = arith.addf %175, %177 : vector<2x128xf32>
      %179 = vector.broadcast %48 : f32 to vector<2x128xf32>
      %180 = arith.mulf %179, %159 : vector<2x128xf32>
      %181 = arith.addf %178, %180 : vector<2x128xf32>
      %182 = vector.broadcast %63 : f32 to vector<2x128xf32>
      %183 = arith.addf %181, %182 : vector<2x128xf32>
      %184 = math.tanh %183 : vector<2x128xf32>
      %185 = vector.broadcast %72 : f32 to vector<2x128xf32>
      %186 = arith.mulf %184, %185 : vector<2x128xf32>
      %187 = arith.addf %183, %186 : vector<2x128xf32>
      %188 = vector.broadcast %51 : f32 to vector<2x128xf32>
      %189 = arith.mulf %188, %143 : vector<2x128xf32>
      %190 = vector.broadcast %54 : f32 to vector<2x128xf32>
      %191 = arith.mulf %190, %151 : vector<2x128xf32>
      %192 = arith.addf %189, %191 : vector<2x128xf32>
      %193 = vector.broadcast %57 : f32 to vector<2x128xf32>
      %194 = arith.mulf %193, %159 : vector<2x128xf32>
      %195 = arith.addf %192, %194 : vector<2x128xf32>
      %196 = vector.broadcast %66 : f32 to vector<2x128xf32>
      %197 = arith.addf %195, %196 : vector<2x128xf32>
      %198 = math.tanh %197 : vector<2x128xf32>
      %199 = vector.broadcast %75 : f32 to vector<2x128xf32>
      %200 = arith.mulf %198, %199 : vector<2x128xf32>
      %201 = arith.addf %197, %200 : vector<2x128xf32>
      %202 = vector.broadcast %78 : f32 to vector<2x128xf32>
      %203 = arith.mulf %202, %173 : vector<2x128xf32>
      %204 = vector.broadcast %81 : f32 to vector<2x128xf32>
      %205 = arith.mulf %204, %187 : vector<2x128xf32>
      %206 = arith.addf %203, %205 : vector<2x128xf32>
      %207 = vector.broadcast %84 : f32 to vector<2x128xf32>
      %208 = arith.mulf %207, %201 : vector<2x128xf32>
      %209 = arith.addf %206, %208 : vector<2x128xf32>
      %210 = vector.broadcast %105 : f32 to vector<2x128xf32>
      %211 = arith.addf %209, %210 : vector<2x128xf32>
      %212 = math.tanh %211 : vector<2x128xf32>
      %213 = vector.broadcast %114 : f32 to vector<2x128xf32>
      %214 = arith.mulf %212, %213 : vector<2x128xf32>
      %215 = arith.addf %211, %214 : vector<2x128xf32>
      %216 = vector.broadcast %87 : f32 to vector<2x128xf32>
      %217 = arith.mulf %216, %173 : vector<2x128xf32>
      %218 = vector.broadcast %90 : f32 to vector<2x128xf32>
      %219 = arith.mulf %218, %187 : vector<2x128xf32>
      %220 = arith.addf %217, %219 : vector<2x128xf32>
      %221 = vector.broadcast %93 : f32 to vector<2x128xf32>
      %222 = arith.mulf %221, %201 : vector<2x128xf32>
      %223 = arith.addf %220, %222 : vector<2x128xf32>
      %224 = vector.broadcast %108 : f32 to vector<2x128xf32>
      %225 = arith.addf %223, %224 : vector<2x128xf32>
      %226 = math.tanh %225 : vector<2x128xf32>
      %227 = vector.broadcast %117 : f32 to vector<2x128xf32>
      %228 = arith.mulf %226, %227 : vector<2x128xf32>
      %229 = arith.addf %225, %228 : vector<2x128xf32>
      %230 = vector.broadcast %96 : f32 to vector<2x128xf32>
      %231 = arith.mulf %230, %173 : vector<2x128xf32>
      %232 = vector.broadcast %99 : f32 to vector<2x128xf32>
      %233 = arith.mulf %232, %187 : vector<2x128xf32>
      %234 = arith.addf %231, %233 : vector<2x128xf32>
      %235 = vector.broadcast %102 : f32 to vector<2x128xf32>
      %236 = arith.mulf %235, %201 : vector<2x128xf32>
      %237 = arith.addf %234, %236 : vector<2x128xf32>
      %238 = vector.broadcast %111 : f32 to vector<2x128xf32>
      %239 = arith.addf %237, %238 : vector<2x128xf32>
      %240 = math.tanh %239 : vector<2x128xf32>
      %241 = vector.broadcast %120 : f32 to vector<2x128xf32>
      %242 = arith.mulf %240, %241 : vector<2x128xf32>
      %243 = arith.addf %239, %242 : vector<2x128xf32>
      %244 = vector.broadcast %123 : f32 to vector<2x128xf32>
      %245 = arith.mulf %244, %215 : vector<2x128xf32>
      %246 = vector.broadcast %126 : f32 to vector<2x128xf32>
      %247 = arith.mulf %246, %229 : vector<2x128xf32>
      %248 = arith.addf %245, %247 : vector<2x128xf32>
      %249 = vector.broadcast %129 : f32 to vector<2x128xf32>
      %250 = arith.mulf %249, %243 : vector<2x128xf32>
      %251 = arith.addf %248, %250 : vector<2x128xf32>
      %252 = vector.broadcast %132 : f32 to vector<2x128xf32>
      %253 = arith.addf %251, %252 : vector<2x128xf32>
      %c0_7 = arith.constant 0 : index
      %254 = arith.index_cast %arg6 : i32 to index
      %c0_8 = arith.constant 0 : index
      %c0_9 = arith.constant 0 : index
      %255 = vector.load %arg5[%c0_7, %254, %c0_8, %c0_9] : memref<1x4x2x128xf32, #tpu.memory_space<vmem>>, vector<1x1x2x128xf32>
      %256 = vector.shape_cast %255 : vector<1x1x2x128xf32> to vector<2x128xf32>
      %257 = vector.shape_cast %253 : vector<2x128xf32> to vector<1x1x2x128xf32>
      tpu.vector_store %arg5[%c0_7, %254, %c0_8, %c0_9], %257 {strides = array<i32>} : memref<1x4x2x128xf32, #tpu.memory_space<vmem>>, vector<1x1x2x128xf32>,
    }
    %c4_i32_1 = arith.constant 4 : i32
    return
  }
  func.func @transform_0(%arg0: i32, %arg1: i32, %arg2: i32) -> i32 {
    %c0_i32 = arith.constant 0 : i32
    %c0_i32_0 = arith.constant 0 : i32
    return %c0_i32 : i32
  }
  func.func @transform_1(%arg0: i32, %arg1: i32, %arg2: i32) -> (i32, i32, i32, i32) {
    %c0_i32 = arith.constant 0 : i32
    %c0_i32_0 = arith.constant 0 : i32
    return %arg0, %arg1, %arg2, %c0_i32 : i32, i32, i32, i32
  }
  func.func @transform_2(%arg0: i32, %arg1: i32, %arg2: i32) -> (i32, i32, i32, i32) {
    %c0_i32 = arith.constant 0 : i32
    %c0_i32_0 = arith.constant 0 : i32
    return %arg0, %arg1, %arg2, %c0_i32 : i32, i32, i32, i32
  }
}

</mosaic_0001>

<llo_original>
// kernel: cdf_estimator_forward.1
$region0: #{cdf_estimator_forward.1}
  #allocation0 [shape = 'u32[]', space=smem, size = 0x4, offset = 0x4, fixed_abs, tag = 'smem constant byte address 0x4 - core index']
  #allocation1 [shape = 'u32[144,128]{1,0:T(1,128)}', space=vmem, size = 0x12000, scoped, tag = 'internal scratch']
  %s0 = inlined_call_operand.vmem [shape: f32[172], index: 0, kind: input, shape index: {}]
  %s1 = inlined_call_operand.vmem [shape: f32[2,4,2,128], index: 1, kind: input, shape index: {}]
  %s2 = inlined_call_operand.vmem [shape: f32[2,4,2,128], index: 2, kind: output, shape index: {}]
  %s3 = sld [smem:[#allocation0]]
  $region52: #{cdf_estimator_forward.1} parent=0
    _
  %s5 = ssub.s32 1, %s3
  %s6 = scalar_select 0, %s5, %s3
  $region1: #{cdf_estimator_forward.1} parent=0
    #allocation2 [shape = 'u8[1024]{0}', space=smem, size = 0x400, scoped, tag = 'input window, operand 0, single buffered']
    #allocation3 [shape = 's32[2]{0}', space=sflag, size = 0x8, scoped, tag = 'scoped memory for cdf_estimator_forward.1']
    %7 = vsyncpa [#allocation3], 0
    loop: start=0, step=1, limit=4
    $region2: #{cdf_estimator_forward.1} parent=1 // loop_pre_header
      _
    $region3: #{cdf_estimator_forward.1} parent=1 // loop_header
      %s9 = sphi 0, %s13
      %p10 = scmp.ge.s32.totalorder %s9, 4
      %s16 = sphi 0, %s35
      %s17 = sphi 0, %s31
      %s18 = sphi 0, %s27
      %s19 = sphi 0, %s16
      %s20 = sphi 0, %s17
      %s21 = sphi 0, %s18
      %s22 = sphi 0, %s19
      %s23 = sphi 0, %s20
      %s24 = sphi 0, %s21
      %s36 = sphi 0, %s36
      %s38 = sphi 0, %s36
      %s39 = sphi 0, %s38
      %s53 = sphi 0, %s39
      %s63 = sphi 0, %s65
      %s66 = sphi 0, %s63
      %s67 = sphi 0, %s66
      %s83 = sphi 0, %s67
      %s93 = sphi 0, %s95
      %s96 = sphi 0, %s93
      %s97 = sphi 0, %s96
      %s113 = sphi 0, %s97
    $region4: #{cdf_estimator_forward.1} parent=1 // loop_header_branch
      %12 = sbr.rel (%p10) target = $region8
    $region5: #{cdf_estimator_forward.1} parent=1 // loop_body
      %s14 = ssub.s32 %s9, 1
      %s15 = ssub.s32 %s9, 2
      %s25 = sadd.s32 1, %s18
      %p26 = scmp.ge.s32.totalorder %s25, 1
      %s27 = scalar_select %p26, 0, %s25
      %s28 = sadd.s32 1, %s17
      %s29 = scalar_select %p26, %s28, %s17
      %p30 = scmp.ge.s32.totalorder %s29, 1
      %s31 = scalar_select %p30, 0, %s29
      %s32 = sadd.s32 1, %s16
      %s33 = scalar_select %p30, %s32, %s16
      %p34 = scmp.ge.s32.totalorder %s33, 2
      %s35 = scalar_select %p34, 0, %s33
      %s37 = sadd.s32 %s36, 1
      %p40 = scmp.eq.s32.totalorder %s9, 1
      %p41 = scmp.ne.s32.totalorder %s36, %s38
      %p42 = scmp.eq.s32.totalorder %s9, 0
      %p43 = por %p41, %p42
      %p44 = scmp.ne.s32.totalorder %s36, %s38
      %p45 = scmp.eq.s32.totalorder %s14, 1
      %p46 = por %p44, %p45
      %p47 = scmp.ne.s32.totalorder %s38, %s39
      %p48 = scmp.eq.s32.totalorder %s14, 0
      %p49 = por %p47, %p48
      %p50 = scmp.ne.s32.totalorder %s38, %s39
      %p51 = scmp.eq.s32.totalorder %s15, 1
      %p52 = por %p50, %p51
      %p54 = scmp.ne.s32.totalorder %s39, %s53
      %p55 = scmp.eq.s32.totalorder %s15, 0
      %p56 = por %p54, %p55
      %s57 = ssub.s32 %s16, %s35
      %s58 = ssub.s32 %s17, %s31
      %s59 = sor.u32 %s57, %s58
      %s60 = ssub.s32 %s18, %s27
      %s61 = sor.u32 %s59, %s60
      %p62 = scmp.eq.s32.totalorder %s61, 0
      %s64 = sadd.s32 %s63, 1
      %s65 = scalar_select %p62, %s63, %s64
      %p68 = pneg %p62
      %p69 = scmp.eq.s32.totalorder %s9, 1
      %p70 = por %p68, %p69
      %p71 = scmp.ne.s32.totalorder %s63, %s66
      %p72 = scmp.eq.s32.totalorder %s9, 0
      %p73 = por %p71, %p72
      %p74 = scmp.ne.s32.totalorder %s63, %s66
      %p75 = scmp.eq.s32.totalorder %s14, 1
      %p76 = por %p74, %p75
      %p77 = scmp.ne.s32.totalorder %s66, %s67
      %p78 = scmp.eq.s32.totalorder %s14, 0
      %p79 = por %p77, %p78
      %p80 = scmp.ne.s32.totalorder %s66, %s67
      %p81 = scmp.eq.s32.totalorder %s15, 1
      %p82 = por %p80, %p81
      %p84 = scmp.ne.s32.totalorder %s67, %s83
      %p85 = scmp.eq.s32.totalorder %s15, 0
      %p86 = por %p84, %p85
      %s87 = ssub.s32 %s16, %s35
      %s88 = ssub.s32 %s17, %s31
      %s89 = sor.u32 %s87, %s88
      %s90 = ssub.s32 %s18, %s27
      %s91 = sor.u32 %s89, %s90
      %p92 = scmp.eq.s32.totalorder %s91, 0
      %s94 = sadd.s32 %s93, 1
      %s95 = scalar_select %p92, %s93, %s94
      %p98 = pneg %p92
      %p99 = scmp.eq.s32.totalorder %s9, 1
      %p100 = por %p98, %p99
      %p101 = scmp.ne.s32.totalorder %s93, %s96
      %p102 = scmp.eq.s32.totalorder %s9, 0
      %p103 = por %p101, %p102
      %p104 = scmp.ne.s32.totalorder %s93, %s96
      %p105 = scmp.eq.s32.totalorder %s14, 1
      %p106 = por %p104, %p105
      %p107 = scmp.ne.s32.totalorder %s96, %s97
      %p108 = scmp.eq.s32.totalorder %s14, 0
      %p109 = por %p107, %p108
      %p110 = scmp.ne.s32.totalorder %s96, %s97
      %p111 = scmp.eq.s32.totalorder %s15, 1
      %p112 = por %p110, %p111
      %p114 = scmp.ne.s32.totalorder %s97, %s113
      %p115 = scmp.eq.s32.totalorder %s15, 0
      %p116 = por %p114, %p115
      %p117 = scmp.le.s32.totalorder 1, %s9
      %p118 = scmp.lt.s32.totalorder %s9, 3
      %p119 = pnand %p117, %p118
      %p120 = pneg %p119
      // Predicated region
      $region9: #{cdf_estimator_forward.1} parent=5 // pred_check
        _
      $region10: #{cdf_estimator_forward.1} parent=5 // pred_check_branch
        %122 = sbr.rel (%p119) target = $region12
      $region11: #{cdf_estimator_forward.1} parent=5 // pred_region
        %s123 = ssub.s32 %s9, 1
        // Predicated region
        $region13: #{cdf_estimator_forward.1} parent=11 // pred_check
          %p124 = pneg %p49
        $region14: #{cdf_estimator_forward.1} parent=11 // pred_check_branch
          %126 = sbr.rel (%p124) target = $region16
        $region15: #{cdf_estimator_forward.1} parent=11 // pred_region
          %s128 = ssub.s32 32, 32
          %129 = vsyncadd [#allocation3], %s128
          %s131 = sshll.u32 %s0, 4
          %s132 = int_to_ptr.vmem [resolvable:$true] %s131
          %134 = dma.vmem_to_smem %s132, 32, [#allocation2], [#allocation3]
        $region16: #{cdf_estimator_forward.1} parent=11 // pred_fallthru
          _
      $region12: #{cdf_estimator_forward.1} parent=5 // pred_fallthru
        _
      %p135 = scmp.lt.s32.totalorder %s9, 2
      // Predicated region
      $region17: #{cdf_estimator_forward.1} parent=5 // pred_check
        %p136 = pneg %p135
      $region18: #{cdf_estimator_forward.1} parent=5 // pred_check_branch
        %138 = sbr.rel (%p136) target = $region20
      $region19: #{cdf_estimator_forward.1} parent=5 // pred_region
        // Predicated region
        $region21: #{cdf_estimator_forward.1} parent=19 // pred_check
          %p139 = pneg %p73
        $region22: #{cdf_estimator_forward.1} parent=19 // pred_check_branch
          %141 = sbr.rel (%p139) target = $region24
        $region23: #{cdf_estimator_forward.1} parent=19 // pred_region
          %s142 = smul.u32 4, %s17
          %p143 = scmp.lt.s32.totalorder %s16, 1
          %s144 = scalar_select %p143, %s16, 1
          %p145 = scmp.lt.s32.totalorder %s142, 3
          %s146 = scalar_select %p145, %s142, 3
          %p147 = scmp.lt.s32.totalorder %s18, 0
          %s148 = scalar_select %p147, %s18, 0
          %s149 = sadd.s32 %s148, %s146
          %s150 = smul.addr %s144, 4
          %s151 = sadd.s32 %s149, %s150
          %s152 = smul.addr %s151, 2
          %s153 = scalar_lea.vmem %s1, %s152
          %s154 = smul.u32 4, %s17
        $region24: #{cdf_estimator_forward.1} parent=19 // pred_fallthru
          _
      $region20: #{cdf_estimator_forward.1} parent=5 // pred_fallthru
        _
      %p155 = scmp.le.s32.totalorder 1, %s9
      %p156 = scmp.lt.s32.totalorder %s9, 3
      %p157 = pnand %p155, %p156
      %p158 = pneg %p157
      // Predicated region
      $region25: #{cdf_estimator_forward.1} parent=5 // pred_check
        _
      $region26: #{cdf_estimator_forward.1} parent=5 // pred_check_branch
        %160 = sbr.rel (%p157) target = $region28
      $region27: #{cdf_estimator_forward.1} parent=5 // pred_region
        %s161 = ssub.s32 %s9, 1
        // Predicated region
        $region29: #{cdf_estimator_forward.1} parent=27 // pred_check
          %p162 = pneg %p49
        $region30: #{cdf_estimator_forward.1} parent=27 // pred_check_branch
          %164 = sbr.rel (%p162) target = $region32
        $region31: #{cdf_estimator_forward.1} parent=27 // pred_region
          %165 = dma.done [#allocation3], 32
        $region32: #{cdf_estimator_forward.1} parent=27 // pred_fallthru
          _
        %166 = sfence
        %p167 = pneg %p49
        %p168 = pneg %p46
        %s169 = smul.u32 4, %s20
        %p170 = scmp.lt.s32.totalorder %s19, 1
        %s171 = scalar_select %p170, %s19, 1
        %p172 = scmp.lt.s32.totalorder %s169, 3
        %s173 = scalar_select %p172, %s169, 3
        %p174 = scmp.lt.s32.totalorder %s21, 0
        %s175 = scalar_select %p174, %s21, 0
        %s176 = sadd.s32 %s175, %s173
        %s177 = smul.addr %s171, 4
        %s178 = sadd.s32 %s176, %s177
        %s179 = smul.addr %s178, 2
        %s180 = scalar_lea.vmem %s1, %s179
        %p181 = pneg %p79
        %p182 = pneg %p76
        %p183 = pneg %p109
        %p184 = pneg %p106
        %s185 = smul.u32 4, %s20
        %p186 = scmp.lt.s32.totalorder %s19, 1
        %s187 = scalar_select %p186, %s19, 1
        %p188 = scmp.lt.s32.totalorder %s185, 3
        %s189 = scalar_select %p188, %s185, 3
        %p190 = scmp.lt.s32.totalorder %s21, 0
        %s191 = scalar_select %p190, %s21, 0
        %s192 = sadd.s32 %s191, %s189
        %s193 = smul.addr %s187, 4
        %s194 = sadd.s32 %s192, %s193
        %s195 = smul.addr %s194, 2
        %s196 = scalar_lea.vmem %s2, %s195
        %s197 = smul.u32 4, %s20
        %p198 = scmp.lt.s32.totalorder %s19, 1
        %s199 = scalar_select %p198, %s19, 1
        %p200 = scmp.lt.s32.totalorder %s197, 3
        %s201 = scalar_select %p200, %s197, 3
        %p202 = scmp.lt.s32.totalorder %s21, 0
        %s203 = scalar_select %p202, %s21, 0
        %s204 = sadd.s32 %s203, %s201
        %s205 = smul.addr %s199, 4
        %s206 = sadd.s32 %s204, %s205
        %s207 = smul.addr %s206, 2
        %s208 = scalar_lea.vmem %s1, %s207
        %s209 = smul.u32 4, %s20
        %s210 = smul.u32 4, %s20
        %p211 = scmp.lt.s32.totalorder %s19, 1
        %s212 = scalar_select %p211, %s19, 1
        %p213 = scmp.lt.s32.totalorder %s210, 3
        %s214 = scalar_select %p213, %s210, 3
        %p215 = scmp.lt.s32.totalorder %s21, 0
        %s216 = scalar_select %p215, %s21, 0
        %s217 = sadd.s32 %s216, %s214
        %s218 = smul.addr %s212, 4
        %s219 = sadd.s32 %s217, %s218
        %s220 = smul.addr %s219, 2
        %s221 = scalar_lea.vmem %s2, %s220
        %s222 = smul.u32 4, %s20
        %s223 = smul.u32 %s20, 4
        loop: start=0, step=1, limit=4
        $region33: #{cdf_estimator_forward.1} parent=27 // loop_pre_header
          _
        $region34: #{cdf_estimator_forward.1} parent=27 // loop_header
          %s225 = sphi 0, %s229
          %p226 = scmp.ge.s32.totalorder %s225, 4
        $region35: #{cdf_estimator_forward.1} parent=27 // loop_header_branch
          %228 = sbr.rel (%p226) target = $region39
        $region36: #{cdf_estimator_forward.1} parent=27 // loop_body
          %s230 = sadd.s32 %s223, %s225
          %s231 = smul.u32 %s230, 43
          %s232 = sld [smem:[#allocation2 + %s231]]
          %s233 = sadd.s32 %s231, 1
          %s234 = sld [smem:[#allocation2 + %s233]]
          %s235 = sadd.s32 %s231, 2
          %s236 = sld [smem:[#allocation2 + %s235]]
          %s237 = sadd.s32 %s231, 3
          %s238 = sld [smem:[#allocation2 + %s237]]
          %s239 = sadd.s32 %s231, 4
          %s240 = sld [smem:[#allocation2 + %s239]]
          %s241 = sadd.s32 %s231, 5
          %s242 = sld [smem:[#allocation2 + %s241]]
          %s243 = sadd.s32 %s231, 6
          %s244 = sld [smem:[#allocation2 + %s243]]
          %s245 = sadd.s32 %s231, 7
          %s246 = sld [smem:[#allocation2 + %s245]]
          %s247 = sadd.s32 %s231, 8
          %s248 = sld [smem:[#allocation2 + %s247]]
          %s249 = sadd.s32 %s231, 9
          %s250 = sld [smem:[#allocation2 + %s249]]
          %s251 = sadd.s32 %s231, 10
          %s252 = sld [smem:[#allocation2 + %s251]]
          %s253 = sadd.s32 %s231, 11
          %s254 = sld [smem:[#allocation2 + %s253]]
          %s255 = sadd.s32 %s231, 12
          %s256 = sld [smem:[#allocation2 + %s255]]
          %s257 = sadd.s32 %s231, 13
          %s258 = sld [smem:[#allocation2 + %s257]]
          %s259 = sadd.s32 %s231, 14
          %s260 = sld [smem:[#allocation2 + %s259]]
          %s261 = sadd.s32 %s231, 15
          %s262 = sld [smem:[#allocation2 + %s261]]
          %s263 = sadd.s32 %s231, 16
          %s264 = sld [smem:[#allocation2 + %s263]]
          %s265 = sadd.s32 %s231, 17
          %s266 = sld [smem:[#allocation2 + %s265]]
          %s267 = sadd.s32 %s231, 18
          %s268 = sld [smem:[#allocation2 + %s267]]
          %s269 = sadd.s32 %s231, 19
          %s270 = sld [smem:[#allocation2 + %s269]]
          %s271 = sadd.s32 %s231, 20
          %s272 = sld [smem:[#allocation2 + %s271]]
          %s273 = sadd.s32 %s231, 21
          %s274 = sld [smem:[#allocation2 + %s273]]
          %s275 = sadd.s32 %s231, 22
          %s276 = sld [smem:[#allocation2 + %s275]]
          %s277 = sadd.s32 %s231, 23
          %s278 = sld [smem:[#allocation2 + %s277]]
          %s279 = sadd.s32 %s231, 24
          %s280 = sld [smem:[#allocation2 + %s279]]
          %s281 = sadd.s32 %s231, 25
          %s282 = sld [smem:[#allocation2 + %s281]]
          %s283 = sadd.s32 %s231, 26
          %s284 = sld [smem:[#allocation2 + %s283]]
          %s285 = sadd.s32 %s231, 27
          %s286 = sld [smem:[#allocation2 + %s285]]
          %s287 = sadd.s32 %s231, 28
          %s288 = sld [smem:[#allocation2 + %s287]]
          %s289 = sadd.s32 %s231, 29
          %s290 = sld [smem:[#allocation2 + %s289]]
          %s291 = sadd.s32 %s231, 30
          %s292 = sld [smem:[#allocation2 + %s291]]
          %s293 = sadd.s32 %s231, 31
          %s294 = sld [smem:[#allocation2 + %s293]]
          %s295 = sadd.s32 %s231, 32
          %s296 = sld [smem:[#allocation2 + %s295]]
          %s297 = sadd.s32 %s231, 33
          %s298 = sld [smem:[#allocation2 + %s297]]
          %s299 = sadd.s32 %s231, 34
          %s300 = sld [smem:[#allocation2 + %s299]]
          %s301 = sadd.s32 %s231, 35
          %s302 = sld [smem:[#allocation2 + %s301]]
          %s303 = sadd.s32 %s231, 36
          %s304 = sld [smem:[#allocation2 + %s303]]
          %s305 = sadd.s32 %s231, 37
          %s306 = sld [smem:[#allocation2 + %s305]]
          %s307 = sadd.s32 %s231, 38
          %s308 = sld [smem:[#allocation2 + %s307]]
          %s309 = sadd.s32 %s231, 39
          %s310 = sld [smem:[#allocation2 + %s309]]
          %s311 = sadd.s32 %s231, 40
          %s312 = sld [smem:[#allocation2 + %s311]]
          %s313 = sadd.s32 %s231, 41
          %s314 = sld [smem:[#allocation2 + %s313]]
          %s315 = sadd.s32 %s231, 42
          %s316 = sld [smem:[#allocation2 + %s315]]
          %s317 = smul.u32 %s225, 2
          %s318 = scalar_lea.vmem %s208, %s317
          %v319 = vld [vmem:[%s318] sm:$0x3]
          %v320 = vstv %s232
          %v321 = vmul.f32 %v320, %v319
          %v322 = vstv %s238
          %v323 = vadd.f32 %v321, %v322
          %v324 = vtanh.pop %v323
          %v325 = vstv %s244
          %v326 = vmul.f32 %v324, %v325
          %v327 = vadd.f32 %v323, %v326
          %v328 = vstv %s234
          %v329 = vmul.f32 %v328, %v319
          %v330 = vstv %s240
          %v331 = vadd.f32 %v329, %v330
          %v332 = vtanh.pop %v331
          %v333 = vstv %s246
          %v334 = vmul.f32 %v332, %v333
          %v335 = vadd.f32 %v331, %v334
          %v336 = vstv %s236
          %v337 = vmul.f32 %v336, %v319
          %v338 = vstv %s242
          %v339 = vadd.f32 %v337, %v338
          %v340 = vtanh.pop %v339
          %v341 = vstv %s248
          %v342 = vmul.f32 %v340, %v341
          %v343 = vadd.f32 %v339, %v342
          %v344 = vstv %s250
          %v345 = vmul.f32 %v344, %v327
          %v346 = vstv %s252
          %v347 = vmul.f32 %v346, %v335
          %v348 = vadd.f32 %v345, %v347
          %v349 = vstv %s254
          %v350 = vmul.f32 %v349, %v343
          %v351 = vadd.f32 %v348, %v350
          %v352 = vstv %s268
          %v353 = vadd.f32 %v351, %v352
          %v354 = vtanh.pop %v353
          %v355 = vstv %s274
          %v356 = vmul.f32 %v354, %v355
          %v357 = vadd.f32 %v353, %v356
          %v358 = vstv %s256
          %v359 = vmul.f32 %v358, %v327
          %v360 = vstv %s258
          %v361 = vmul.f32 %v360, %v335
          %v362 = vadd.f32 %v359, %v361
          %v363 = vstv %s260
          %v364 = vmul.f32 %v363, %v343
          %v365 = vadd.f32 %v362, %v364
          %v366 = vstv %s270
          %v367 = vadd.f32 %v365, %v366
          %v368 = vtanh.pop %v367
          %v369 = vstv %s276
          %v370 = vmul.f32 %v368, %v369
          %v371 = vadd.f32 %v367, %v370
          %v372 = vstv %s262
          %v373 = vmul.f32 %v372, %v327
          %v374 = vstv %s264
          %v375 = vmul.f32 %v374, %v335
          %v376 = vadd.f32 %v373, %v375
          %v377 = vstv %s266
          %v378 = vmul.f32 %v377, %v343
          %v379 = vadd.f32 %v376, %v378
          %v380 = vstv %s272
          %v381 = vadd.f32 %v379, %v380
          %v382 = vtanh.pop %v381
          %v383 = vstv %s278
          %v384 = vmul.f32 %v382, %v383
          %v385 = vadd.f32 %v381, %v384
          %v386 = vstv %s280
          %v387 = vmul.f32 %v386, %v357
          %v388 = vstv %s282
          %v389 = vmul.f32 %v388, %v371
          %v390 = vadd.f32 %v387, %v389
          %v391 = vstv %s284
          %v392 = vmul.f32 %v391, %v385
          %v393 = vadd.f32 %v390, %v392
          %v394 = vstv %s298
          %v395 = vadd.f32 %v393, %v394
          %v396 = vtanh.pop %v395
          %v397 = vstv %s304
          %v398 = vmul.f32 %v396, %v397
          %v399 = vadd.f32 %v395, %v398
          %v400 = vstv %s286
          %v401 = vmul.f32 %v400, %v357
          %v402 = vstv %s288
          %v403 = vmul.f32 %v402, %v371
          %v404 = vadd.f32 %v401, %v403
          %v405 = vstv %s290
          %v406 = vmul.f32 %v405, %v385
          %v407 = vadd.f32 %v404, %v406
          %v408 = vstv %s300
          %v409 = vadd.f32 %v407, %v408
          %v410 = vtanh.pop %v409
          %v411 = vstv %s306
          %v412 = vmul.f32 %v410, %v411
          %v413 = vadd.f32 %v409, %v412
          %v414 = vstv %s292
          %v415 = vmul.f32 %v414, %v357
          %v416 = vstv %s294
          %v417 = vmul.f32 %v416, %v371
          %v418 = vadd.f32 %v415, %v417
          %v419 = vstv %s296
          %v420 = vmul.f32 %v419, %v385
          %v421 = vadd.f32 %v418, %v420
          %v422 = vstv %s302
          %v423 = vadd.f32 %v421, %v422
          %v424 = vtanh.pop %v423
          %v425 = vstv %s308
          %v426 = vmul.f32 %v424, %v425
          %v427 = vadd.f32 %v423, %v426
          %v428 = vstv %s310
          %v429 = vmul.f32 %v428, %v399
          %v430 = vstv %s312
          %v431 = vmul.f32 %v430, %v413
          %v432 = vadd.f32 %v429, %v431
          %v433 = vstv %s314
          %v434 = vmul.f32 %v433, %v427
          %v435 = vadd.f32 %v432, %v434
          %v436 = vstv %s316
          %v437 = vadd.f32 %v435, %v436
          %s438 = scalar_lea.vmem %s221, %s317
          %439 = vst [vmem:[%s438] sm:$0x3] %v437
        $region37: #{cdf_estimator_forward.1} parent=27 // loop_footer
          %s229 = sadd.s32 1, %s225
        $region38: #{cdf_estimator_forward.1} parent=27 // loop_footer_branch
          %224 = sbr.rel target = $region34
        $region39: #{cdf_estimator_forward.1} parent=27 // loop_exit
          _
        %s440 = smul.u32 4, %s20
        %p441 = scmp.lt.s32.totalorder %s19, 1
        %s442 = scalar_select %p441, %s19, 1
        %p443 = scmp.lt.s32.totalorder %s440, 3
        %s444 = scalar_select %p443, %s440, 3
        %p445 = scmp.lt.s32.totalorder %s21, 0
        %s446 = scalar_select %p445, %s21, 0
        %s447 = sadd.s32 %s446, %s444
        %s448 = smul.addr %s442, 4
        %s449 = sadd.s32 %s447, %s448
        %s450 = smul.addr %s449, 2
        %s451 = scalar_lea.vmem %s2, %s450
        // Predicated region
        $region40: #{cdf_estimator_forward.1} parent=27 // pred_check
          %p452 = pneg %p106
        $region41: #{cdf_estimator_forward.1} parent=27 // pred_check_branch
          %454 = sbr.rel (%p452) target = $region43
        $region42: #{cdf_estimator_forward.1} parent=27 // pred_region
          %s455 = smul.u32 4, %s20
        $region43: #{cdf_estimator_forward.1} parent=27 // pred_fallthru
          _
      $region28: #{cdf_estimator_forward.1} parent=5 // pred_fallthru
        _
      %p456 = scmp.le.s32.totalorder 2, %s9
      // Predicated region
      $region44: #{cdf_estimator_forward.1} parent=5 // pred_check
        %p457 = pneg %p456
      $region45: #{cdf_estimator_forward.1} parent=5 // pred_check_branch
        %459 = sbr.rel (%p457) target = $region47
      $region46: #{cdf_estimator_forward.1} parent=5 // pred_region
        %s460 = ssub.s32 %s9, 2
        // Predicated region
        $region48: #{cdf_estimator_forward.1} parent=46 // pred_check
          %p461 = pneg %p112
        $region49: #{cdf_estimator_forward.1} parent=46 // pred_check_branch
          %463 = sbr.rel (%p461) target = $region51
        $region50: #{cdf_estimator_forward.1} parent=46 // pred_region
          %s464 = smul.u32 4, %s23
          %p465 = scmp.lt.s32.totalorder %s22, 1
          %s466 = scalar_select %p465, %s22, 1
          %p467 = scmp.lt.s32.totalorder %s464, 3
          %s468 = scalar_select %p467, %s464, 3
          %p469 = scmp.lt.s32.totalorder %s24, 0
          %s470 = scalar_select %p469, %s24, 0
          %s471 = sadd.s32 %s470, %s468
          %s472 = smul.addr %s466, 4
          %s473 = sadd.s32 %s471, %s472
          %s474 = smul.addr %s473, 2
          %s475 = scalar_lea.vmem %s2, %s474
        $region51: #{cdf_estimator_forward.1} parent=46 // pred_fallthru
          _
      $region47: #{cdf_estimator_forward.1} parent=5 // pred_fallthru
        _
    $region6: #{cdf_estimator_forward.1} parent=1 // loop_footer
      %s13 = sadd.s32 1, %s9
    $region7: #{cdf_estimator_forward.1} parent=1 // loop_footer_branch
      %8 = sbr.rel target = $region3
    $region8: #{cdf_estimator_forward.1} parent=1 // loop_exit
      _
    %476 = vsyncpa [#allocation3], 1
    %s477 = scalar_lea.sflag [#allocation3], 1
    %478 = vsyncpa %s477, 1

</llo_original>
